<compile_context>
chip_gen: v6e
topology: v6e:2x2x1
jax: 0.10.0
libtpu: 0.0.40
codegen_flags: <defaults>
</compile_context>

<pallas_src>
import jax
import jax.numpy as jnp
from jax.experimental import pallas as pl
from jax.experimental.pallas import tpu as pltpu

IN_FEATURES = 5
OUT_FEATURES = 64
K_PAD = 8                     # contraction dim padded to a sublane multiple (MXU path)
GRID_BATCH_THRESHOLD = 512    # below this, gridless; at/above, batch-gridded MXU path
BATCH_BLOCK = 512             # rows per batch block for the gridded path


def prepare_weight(w):
    """torch layout (out_features, in_features) -> (K_PAD, out_features).

    Transposes once and zero-pads the contraction axis 5 -> 8 so the MXU path
    sees sublane-aligned operands.  The zero rows contribute nothing.
    Done once, outside the per-call hot path.
    """
    n, k = w.shape
    assert k <= K_PAD
    return jnp.zeros((K_PAD, n), dtype=w.dtype).at[:k, :].set(jnp.asarray(w).T)


def _linear_vpu_kernel(x_ref, w_ref, o_ref):
    """Small-B path: K=5 contraction as VPU broadcast FMAs, balanced add tree."""
    x = x_ref[...].astype(jnp.float32)       # (B, 5)
    w = w_ref[...].astype(jnp.float32)       # (K_PAD, 64); only rows [0, 5) used
    k_dim = x.shape[1]
    terms = [x[:, k:k + 1] * w[k:k + 1, :] for k in range(k_dim)]
    # Balanced reduction: depth ceil(log2(5)) = 3 instead of a serial chain of 5.
    while len(terms) > 1:
        nxt = []
        for i in range(0, len(terms), 2):
            if i + 1 < len(terms):
                nxt.append(terms[i] + terms[i + 1])
            else:
                nxt.append(terms[i])
        terms = nxt
    o_ref[...] = terms[0].astype(o_ref.dtype)


def _linear_mxu_kernel(x_ref, w_ref, o_ref):
    """Large-B path: one MXU matmul per (BATCH_BLOCK, K_PAD) block, f32 accum."""
    o_ref[...] = jnp.dot(
        x_ref[...], w_ref[...], preferred_element_type=jnp.float32
    ).astype(o_ref.dtype)


def mlp_forward(x, w_t):
    """x: (B, in_features) f32, w_t: (K_PAD, out_features) f32 from prepare_weight."""
    B, K = x.shape
    k_pad, N = w_t.shape
    assert K == IN_FEATURES and k_pad == K_PAD and N == OUT_FEATURES

    if B < GRID_BATCH_THRESHOLD:
        # Gridless: whole arrays as VMEM blocks, natural (B, 64) output,
        # no pipeline scaffolding, no wrapper slice.
        return pl.pallas_call(
            _linear_vpu_kernel,
            out_shape=jax.ShapeDtypeStruct((B, N), x.dtype),
            in_specs=[
                pl.BlockSpec(memory_space=pltpu.MemorySpace.VMEM),
                pl.BlockSpec(memory_space=pltpu.MemorySpace.VMEM),
            ],
            out_specs=pl.BlockSpec(memory_space=pltpu.MemorySpace.VMEM),
        )(x, w_t)

    # Gridded MXU path for large B: pad K once (5 -> 8) so operands are aligned.
    x_pad = jnp.pad(x, ((0, 0), (0, K_PAD - K))) if K < K_PAD else x
    block_b = min(BATCH_BLOCK, B)
    grid = (pl.cdiv(B, block_b),)
    return pl.pallas_call(
        _linear_mxu_kernel,
        out_shape=jax.ShapeDtypeStruct((B, N), x.dtype),
        grid_spec=pltpu.PrefetchScalarGridSpec(
            num_scalar_prefetch=0,
            grid=grid,
            in_specs=[
                pl.BlockSpec((block_b, K_PAD), lambda i: (i, 0)),
                # Weight is a grid-constant block: same tile every step, so it
                # stays VMEM-resident instead of being re-DMA'd per block.
                pl.BlockSpec((K_PAD, N), lambda i: (0, 0)),
            ],
            out_specs=pl.BlockSpec((block_b, N), lambda i: (i, 0)),
        ),
        compiler_params=pltpu.CompilerParams(
            dimension_semantics=("parallel",)),
    )(x_pad, w_t)


if __name__ == "__main__":
    key = jax.random.PRNGKey(0)
    k_x, k_w, k_x2 = jax.random.split(key, 3)

    # torch.nn.Linear(5, 64, bias=False) stores weight as (out_features, in_features).
    w = jax.random.normal(k_w, (OUT_FEATURES, IN_FEATURES), dtype=jnp.float32) * 0.1
    w_t = prepare_weight(w)  # done once, outside the hot path

    # Small batch -> gridless VPU path.
    B = 8
    x = jax.random.normal(k_x, (B, IN_FEATURES), dtype=jnp.float32)
    out = mlp_forward(x, w_t)
    jax.block_until_ready(out)
    ref = x @ w.T
    assert out.shape == (B, OUT_FEATURES)
    assert jnp.allclose(out, ref, atol=1e-5, rtol=1e-5)

    # Large batch -> batch-gridded MXU path (exercised to keep both paths honest).
    B2 = 1024
    x2 = jax.random.normal(k_x2, (B2, IN_FEATURES), dtype=jnp.float32)
    out2 = mlp_forward(x2, w_t)
    jax.block_until_ready(out2)
    ref2 = x2 @ w.T
    assert out2.shape == (B2, OUT_FEATURES)
    assert jnp.allclose(out2, ref2, atol=5e-3, rtol=5e-3)

    print("KERNEL_OK")
</pallas_src>

<mosaic_0001>
module attributes {stable_mosaic.version = 11 : i64} {
  func.func @_linear_vpu_kernel(%arg0: memref<8x5xf32, #tpu.memory_space<vmem>>, %arg1: memref<8x64xf32, #tpu.memory_space<vmem>>, %arg2: memref<8x64xf32, #tpu.memory_space<vmem>>) attributes {dimension_semantics = [], scalar_prefetch = 0 : i64, scratch_operands = 0 : i64, tpu.core_type = #tpu.core_type<tc>} {
    %c0 = arith.constant 0 : index
    %c0_0 = arith.constant 0 : index
    %0 = vector.load %arg0[%c0, %c0_0] : memref<8x5xf32, #tpu.memory_space<vmem>>, vector<8x5xf32>
    %c0_1 = arith.constant 0 : index
    %c0_2 = arith.constant 0 : index
    %1 = vector.load %arg1[%c0_1, %c0_2] : memref<8x64xf32, #tpu.memory_space<vmem>>, vector<8x64xf32>
    %2 = vector.extract_strided_slice %0 {offsets = [0, 0], sizes = [8, 1], strides = [1, 1]} : vector<8x5xf32> to vector<8x1xf32>
    %3 = vector.extract_strided_slice %1 {offsets = [0, 0], sizes = [1, 64], strides = [1, 1]} : vector<8x64xf32> to vector<1x64xf32>
    %4 = vector.broadcast %2 : vector<8x1xf32> to vector<8x64xf32>
    %5 = vector.broadcast %3 : vector<1x64xf32> to vector<8x64xf32>
    %6 = arith.mulf %4, %5 : vector<8x64xf32>
    %7 = vector.extract_strided_slice %0 {offsets = [0, 1], sizes = [8, 1], strides = [1, 1]} : vector<8x5xf32> to vector<8x1xf32>
    %8 = vector.extract_strided_slice %1 {offsets = [1, 0], sizes = [1, 64], strides = [1, 1]} : vector<8x64xf32> to vector<1x64xf32>
    %9 = vector.broadcast %7 : vector<8x1xf32> to vector<8x64xf32>
    %10 = vector.broadcast %8 : vector<1x64xf32> to vector<8x64xf32>
    %11 = arith.mulf %9, %10 : vector<8x64xf32>
    %12 = vector.extract_strided_slice %0 {offsets = [0, 2], sizes = [8, 1], strides = [1, 1]} : vector<8x5xf32> to vector<8x1xf32>
    %13 = vector.extract_strided_slice %1 {offsets = [2, 0], sizes = [1, 64], strides = [1, 1]} : vector<8x64xf32> to vector<1x64xf32>
    %14 = vector.broadcast %12 : vector<8x1xf32> to vector<8x64xf32>
    %15 = vector.broadcast %13 : vector<1x64xf32> to vector<8x64xf32>
    %16 = arith.mulf %14, %15 : vector<8x64xf32>
    %17 = vector.extract_strided_slice %0 {offsets = [0, 3], sizes = [8, 1], strides = [1, 1]} : vector<8x5xf32> to vector<8x1xf32>
    %18 = vector.extract_strided_slice %1 {offsets = [3, 0], sizes = [1, 64], strides = [1, 1]} : vector<8x64xf32> to vector<1x64xf32>
    %19 = vector.broadcast %17 : vector<8x1xf32> to vector<8x64xf32>
    %20 = vector.broadcast %18 : vector<1x64xf32> to vector<8x64xf32>
    %21 = arith.mulf %19, %20 : vector<8x64xf32>
    %22 = vector.extract_strided_slice %0 {offsets = [0, 4], sizes = [8, 1], strides = [1, 1]} : vector<8x5xf32> to vector<8x1xf32>
    %23 = vector.extract_strided_slice %1 {offsets = [4, 0], sizes = [1, 64], strides = [1, 1]} : vector<8x64xf32> to vector<1x64xf32>
    %24 = vector.broadcast %22 : vector<8x1xf32> to vector<8x64xf32>
    %25 = vector.broadcast %23 : vector<1x64xf32> to vector<8x64xf32>
    %26 = arith.mulf %24, %25 : vector<8x64xf32>
    %27 = arith.addf %6, %11 : vector<8x64xf32>
    %28 = arith.addf %16, %21 : vector<8x64xf32>
    %29 = arith.addf %27, %28 : vector<8x64xf32>
    %30 = arith.addf %29, %26 : vector<8x64xf32>
    %c0_3 = arith.constant 0 : index
    %c0_4 = arith.constant 0 : index
    %31 = vector.load %arg2[%c0_3, %c0_4] : memref<8x64xf32, #tpu.memory_space<vmem>>, vector<8x64xf32>
    tpu.vector_store %arg2[%c0_3, %c0_4], %30 {strides = array<i32>} : memref<8x64xf32, #tpu.memory_space<vmem>>, vector<8x64xf32>,
    return
  }
}

</mosaic_0001>

<llo_original>
// kernel: tpu_custom_call.1
$region0: #{tpu_custom_call.1}
  #allocation0 [shape = 'u32[]', space=smem, size = 0x4, offset = 0x4, fixed_abs, tag = 'smem constant byte address 0x4 - core index']
  #allocation1 [shape = 'u32[144,128]{1,0:T(1,128)}', space=vmem, size = 0x12000, scoped, tag = 'internal scratch']
  %s0 = inlined_call_operand.hbm [shape: f32[8,5], index: 0, kind: input, shape index: {}]
  %s1 = inlined_call_operand.hbm [shape: f32[8,64], index: 1, kind: input, shape index: {}]
  %s2 = inlined_call_operand.hbm [shape: f32[8,64], index: 2, kind: output, shape index: {}]
  %s3 = sld [smem:[#allocation0]]
  $region26: #{tpu_custom_call.1} parent=0
    _
  %s5 = ssub.s32 1, %s3
  %s6 = scalar_select 0, %s5, %s3
  $region1: #{tpu_custom_call.1} parent=0
    #allocation2 [shape = 'u8[4096]{0}', space=vmem, size = 0x1000, scoped, tag = 'input window, operand 0, single buffered']
    #allocation3 [shape = 's32[1]{0}', space=sflag, size = 0x4, scoped, tag = 'scoped memory for tpu_custom_call.1']
    #allocation4 [shape = 's32[1]{0}', space=sflag, size = 0x4, scoped, tag = 'scoped memory for tpu_custom_call.1']
    #allocation5 [shape = 'u8[4096]{0}', space=vmem, size = 0x1000, scoped, tag = 'input window, operand 1, single buffered']
    #allocation6 [shape = 's32[1]{0}', space=sflag, size = 0x4, scoped, tag = 'scoped memory for tpu_custom_call.1']
    #allocation7 [shape = 'u8[4096]{0}', space=vmem, size = 0x1000, scoped, tag = 'output window, operand 0, single buffered']
    %7 = vsyncpa [#allocation3], 0
    %8 = vsyncpa [#allocation6], 0
    %9 = vsyncpa [#allocation4], 0
    // Predicated region
    $region2: #{tpu_custom_call.1} parent=1 // pred_check
      _
    $region3: #{tpu_custom_call.1} parent=1 // pred_check_branch
      %11 = sbr.rel (0) target = $region5
    $region4: #{tpu_custom_call.1} parent=1 // pred_region
      %s13 = ssub.s32 128, 128
      %14 = vsyncadd [#allocation3], %s13
      %s16 = sshll.u32 [#allocation2], 4
      %s17 = int_to_ptr.vmem [resolvable:$true] %s16
      %19 = dma.hbm_to_vmem [thread:$0]  %s0, 128, %s17, [#allocation3]
    $region5: #{tpu_custom_call.1} parent=1 // pred_fallthru
      _
    // Predicated region
    $region6: #{tpu_custom_call.1} parent=1 // pred_check
      _
    $region7: #{tpu_custom_call.1} parent=1 // pred_check_branch
      %21 = sbr.rel (0) target = $region9
    $region8: #{tpu_custom_call.1} parent=1 // pred_region
      %s23 = ssub.s32 128, 128
      %24 = vsyncadd [#allocation6], %s23
      %s26 = sshll.u32 [#allocation5], 4
      %s27 = int_to_ptr.vmem [resolvable:$true] %s26
      %29 = dma.hbm_to_vmem [thread:$0]  %s1, 128, %s27, [#allocation6]
    $region9: #{tpu_custom_call.1} parent=1 // pred_fallthru
      _
    // Predicated region
    $region10: #{tpu_custom_call.1} parent=1 // pred_check
      _
    $region11: #{tpu_custom_call.1} parent=1 // pred_check_branch
      %31 = sbr.rel (0) target = $region13
    $region12: #{tpu_custom_call.1} parent=1 // pred_region
      %32 = dma.done [#allocation3], 128
    $region13: #{tpu_custom_call.1} parent=1 // pred_fallthru
      _
    // Predicated region
    $region14: #{tpu_custom_call.1} parent=1 // pred_check
      _
    $region15: #{tpu_custom_call.1} parent=1 // pred_check_branch
      %34 = sbr.rel (0) target = $region17
    $region16: #{tpu_custom_call.1} parent=1 // pred_region
      %35 = dma.done [#allocation6], 128
    $region17: #{tpu_custom_call.1} parent=1 // pred_fallthru
      _
    %v36 = vld [vmem:[#allocation2] sm:$0xff]
    %v37 = vld [vmem:[#allocation5] sm:$0xff]
    %39 = vset.pattern.permute.xlu0 0
    %40 = vperm.xlu0 %39, %v36
    %v41 = vpop.permute.xlu0 %40
    %v43 = vlaneseq
    %v44 = vshrl.u32 %v43, 7
    %v45 = vsub.s32 0, %v44
    %v46 = vrot.slane %v37, %v45
    %v47 = vmul.f32 %v41, %v46
    %48 = vset.pattern.permute.xlu0 1
    %49 = vperm.xlu0 %48, %v36
    %v50 = vpop.permute.xlu0 %49
    %v52 = vlaneseq
    %v53 = vshrl.u32 %v52, 7
    %v54 = vsub.s32 1, %v53
    %v55 = vrot.slane %v37, %v54
    %v56 = vmul.f32 %v50, %v55
    %57 = vset.pattern.permute.xlu0 2
    %58 = vperm.xlu0 %57, %v36
    %v59 = vpop.permute.xlu0 %58
    %v61 = vlaneseq
    %v62 = vshrl.u32 %v61, 7
    %v63 = vsub.s32 2, %v62
    %v64 = vrot.slane %v37, %v63
    %v65 = vmul.f32 %v59, %v64
    %66 = vset.pattern.permute.xlu0 3
    %67 = vperm.xlu0 %66, %v36
    %v68 = vpop.permute.xlu0 %67
    %v70 = vlaneseq
    %v71 = vshrl.u32 %v70, 7
    %v72 = vsub.s32 3, %v71
    %v73 = vrot.slane %v37, %v72
    %v74 = vmul.f32 %v68, %v73
    %75 = vset.pattern.permute.xlu0 4
    %76 = vperm.xlu0 %75, %v36
    %v77 = vpop.permute.xlu0 %76
    %v79 = vlaneseq
    %v80 = vshrl.u32 %v79, 7
    %v81 = vsub.s32 4, %v80
    %v82 = vrot.slane %v37, %v81
    %v83 = vmul.f32 %v77, %v82
    %v84 = vadd.f32 %v47, %v56
    %v85 = vadd.f32 %v65, %v74
    %v86 = vadd.f32 %v84, %v85
    %v87 = vadd.f32 %v86, %v83
    %vm88 = vcmask 523264
    %89 = vst.msk [vmem:[#allocation7] sm:$0xff] %vm88, %v87
    // Predicated region
    $region18: #{tpu_custom_call.1} parent=1 // pred_check
      _
    $region19: #{tpu_custom_call.1} parent=1 // pred_check_branch
      %91 = sbr.rel (0) target = $region21
    $region20: #{tpu_custom_call.1} parent=1 // pred_region
      %s93 = ssub.s32 128, 128
      %94 = vsyncadd [#allocation4], %s93
      %s96 = sshll.u32 [#allocation7], 4
      %s97 = int_to_ptr.vmem [resolvable:$true] %s96
      %99 = dma.vmem_to_hbm [thread:$0]  %s97, 128, %s2, [#allocation4]
    $region21: #{tpu_custom_call.1} parent=1 // pred_fallthru
      _
    // Predicated region
    $region22: #{tpu_custom_call.1} parent=1 // pred_check
      _
    $region23: #{tpu_custom_call.1} parent=1 // pred_check_branch
      %101 = sbr.rel (0) target = $region25
    $region24: #{tpu_custom_call.1} parent=1 // pred_region
      %102 = dma.done [#allocation4], 128
    $region25: #{tpu_custom_call.1} parent=1 // pred_fallthru
      _
    %103 = vsyncpa [#allocation3], 1
    %104 = vsyncpa [#allocation6], 1
    %105 = vsyncpa [#allocation4], 1

</llo_original>
